<compile_context>
chip_gen: v5e
topology: v5e:2x2
jax: 0.10.0
libtpu: 0.0.40
codegen_flags: <defaults>
</compile_context>

<pallas_src>
import functools

import jax
import jax.numpy as jnp
from jax.experimental import pallas as pl
from jax.experimental.pallas import tpu as pltpu


def _round_up(n, m):
    return ((n + m - 1) // m) * m


def _dueling_kernel(x_ref, p_ref, out_ref, *, n_features, f_pad, slab_width, n_actions):
    F, F8, W, A = n_features, f_pad, slab_width, n_actions

    # Static, 8-row-aligned offsets into the packed parameter slab (see pack_params).
    r_w2 = F8
    r_w3 = F8 + W
    r_wh = F8 + 2 * W
    r_b = F8 + 3 * W

    x = x_ref[...]
    cdt = p_ref.dtype

    w1 = p_ref[0:F, :]                 # (F, W)   start aligned at row 0
    w2 = p_ref[r_w2:r_w2 + W, :]       # (W, W)   rows >= H are zero
    w3 = p_ref[r_w3:r_w3 + W, :]       # (W, W)
    wh = p_ref[r_wh:r_wh + W, :]       # (W, W)   folded dueling head, cols >= A are zero
    bias = p_ref[r_b:r_b + 8, :]       # single aligned (8, W) load, rows 0..3 hold biases
    b1 = bias[0:1, :]
    b2 = bias[1:2, :]
    b3 = bias[2:3, :]
    bh = bias[3:4, :]

    # pre_net: 3x (Linear -> ReLU). f32 accumulation on the MXU; lanes beyond the
    # logical hidden width stay exactly zero (zero-padded weights + zero biases).
    h = jnp.maximum(jnp.dot(x, w1, preferred_element_type=jnp.float32) + b1, 0.0).astype(cdt)
    h = jnp.maximum(jnp.dot(h, w2, preferred_element_type=jnp.float32) + b2, 0.0).astype(cdt)
    h = jnp.maximum(jnp.dot(h, w3, preferred_element_type=jnp.float32) + b3, 0.0).astype(cdt)

    # Folded dueling head: one matmul + bias add; column j already encodes
    # value + (advantage_j - mean(advantage)).
    y = jnp.dot(h, wh, preferred_element_type=jnp.float32) + bh
    out_ref[...] = y[:, :A].astype(out_ref.dtype)


def pack_params(params, *, dtype=jnp.float32):
    """Pack all weights/biases into one lane-dense, 8-row-aligned slab.

    Layout (rows):
      [0, F8)            w1   (F x H, zero-padded)
      [F8, F8+W)         w2   (H x H, zero-padded to W x W)
      [F8+W, F8+2W)      w3   (H x H, zero-padded to W x W)
      [F8+2W, F8+3W)     wh   folded head (H x A, zero-padded to W x W)
      [F8+3W, F8+3W+8)   b1, b2, b3, bh (one row each) + 4 zero rows
    with W = round_up(max(H, A), 128) and F8 = round_up(F, 8).
    """
    w1, w2, w3 = params["w1"], params["w2"], params["w3"]
    wv, wa = params["wv"], params["wa"]
    b1, b2, b3 = params["b1"], params["b2"], params["b3"]
    bv, ba = params["bv"], params["ba"]

    F, H = w1.shape
    A = wa.shape[1]
    F8 = _round_up(F, 8)
    W = _round_up(max(H, A), 128)

    # Fold the dueling combine (value + adv - mean(adv)) into the head weights/bias.
    wh = wv + (wa - jnp.mean(wa, axis=1, keepdims=True))   # (H, A)
    bh = bv + (ba - jnp.mean(ba, axis=1, keepdims=True))   # (1, A)

    def pad2(a, rows, cols):
        return jnp.pad(a, ((0, rows - a.shape[0]), (0, cols - a.shape[1])))

    bias_blk = jnp.concatenate(
        [pad2(b1, 1, W), pad2(b2, 1, W), pad2(b3, 1, W), pad2(bh, 1, W),
         jnp.zeros((4, W), jnp.float32)], axis=0)           # (8, W), aligned block

    slab = jnp.concatenate([
        pad2(w1, F8, W),
        pad2(w2, W, W),
        pad2(w3, W, W),
        pad2(wh, W, W),
        bias_blk,
    ], axis=0).astype(dtype)
    return slab, F, F8, W, A


def q_dueling_forward(x, params, *, block_b=None, use_bf16=False, vmem_limit_bytes=None):
    """x: (B, n_features) f32. params: dict of weights/biases (see init_params)."""
    B, F = x.shape
    dtype = jnp.bfloat16 if use_bf16 else jnp.float32
    slab, Fp, F8, W, A = pack_params(params, dtype=dtype)
    assert Fp == F, "x feature dim does not match params"
    if use_bf16:
        x = x.astype(jnp.bfloat16)

    # Batch tile: big tiles amortize the ~0.35us/grid-step overhead; for moderate
    # batches aim for >=2 tiles so the parallel axis can shard across both v7x TCs.
    if block_b is None:
        if B > 1024:
            block_b = 512
        elif B >= 16:
            block_b = max(8, _round_up(pl.cdiv(B, 2), 8))
        else:
            block_b = max(8, _round_up(B, 8))

    grid = (pl.cdiv(B, block_b),)   # ragged last tile is masked by Pallas; no wrapper pad

    if vmem_limit_bytes is None:
        itemsize = jnp.dtype(dtype).itemsize
        needed = (slab.size * slab.dtype.itemsize            # params, VMEM-resident
                  + 2 * block_b * F * itemsize               # double-buffered x tiles
                  + 2 * block_b * A * 4                      # double-buffered out tiles
                  + (4 << 20))                               # headroom
        # >= default scoped limit on v5e (16 MiB), <= v7x physical (64 MiB).
        vmem_limit_bytes = int(min(48 << 20, max(32 << 20, needed)))

    out = pl.pallas_call(
        functools.partial(_dueling_kernel,
                          n_features=F, f_pad=F8, slab_width=W, n_actions=A),
        out_shape=jax.ShapeDtypeStruct((B, A), jnp.float32),
        grid=grid,
        in_specs=[
            pl.BlockSpec((block_b, F), lambda i: (i, 0)),    # batch tile of x
            pl.BlockSpec(slab.shape, lambda i: (0, 0)),      # params stay VMEM-resident
        ],
        out_specs=pl.BlockSpec((block_b, A), lambda i: (i, 0)),
        compiler_params=pltpu.CompilerParams(
            dimension_semantics=("parallel",),               # shard batch tiles (v7x megacore)
            vmem_limit_bytes=vmem_limit_bytes,
        ),
    )(x, slab)
    return out


def init_params(key, n_features, n_hiddens, n_actions):
    """Deterministic PyTorch-nn.Linear-style init: U(-1/sqrt(fan_in), +1/sqrt(fan_in)).
    Weights stored already-transposed as (in, out)."""
    def linear(k, fan_in, fan_out):
        kw, kb = jax.random.split(k)
        bound = 1.0 / jnp.sqrt(jnp.float32(fan_in))
        w = jax.random.uniform(kw, (fan_in, fan_out), jnp.float32, -bound, bound)
        b = jax.random.uniform(kb, (1, fan_out), jnp.float32, -bound, bound)
        return w, b

    k1, k2, k3, kv, ka = jax.random.split(key, 5)
    w1, b1 = linear(k1, n_features, n_hiddens)
    w2, b2 = linear(k2, n_hiddens, n_hiddens)
    w3, b3 = linear(k3, n_hiddens, n_hiddens)
    wv, bv = linear(kv, n_hiddens, 1)
    wa, ba = linear(ka, n_hiddens, n_actions)
    return dict(w1=w1, b1=b1, w2=w2, b2=b2, w3=w3, b3=b3,
                wv=wv, bv=bv, wa=wa, ba=ba)


def reference_forward(x, p):
    """Pure-JAX reference matching the PyTorch forward semantics."""
    h = jax.nn.relu(x @ p["w1"] + p["b1"])
    h = jax.nn.relu(h @ p["w2"] + p["b2"])
    h = jax.nn.relu(h @ p["w3"] + p["b3"])
    value = h @ p["wv"] + p["bv"]
    adv = h @ p["wa"] + p["ba"]
    return value + (adv - jnp.mean(adv, axis=1, keepdims=True))


if __name__ == "__main__":
    n_features, n_hiddens, n_actions = 16, 32, 4

    key = jax.random.PRNGKey(0)
    kx, kp, kx2 = jax.random.split(key, 3)
    params = init_params(kp, n_features, n_hiddens, n_actions)

    # Small batch: single grid tile.
    x = jax.random.normal(kx, (8, n_features), jnp.float32)
    out = jax.block_until_ready(q_dueling_forward(x, params))
    ref = reference_forward(x, params)
    assert out.shape == (8, n_actions)
    assert jnp.allclose(out, ref, atol=1e-4, rtol=1e-4), "mismatch vs reference (B=8)"

    # Ragged batch: two grid tiles with a masked partial tail (no wrapper pad / slice).
    x2 = jax.random.normal(kx2, (300, n_features), jnp.float32)
    out2 = jax.block_until_ready(q_dueling_forward(x2, params))
    ref2 = reference_forward(x2, params)
    assert out2.shape == (300, n_actions)
    assert jnp.allclose(out2, ref2, atol=1e-4, rtol=1e-4), "mismatch vs reference (B=300)"

    print("KERNEL_OK")
</pallas_src>

<mosaic_0001>
module attributes {stable_mosaic.version = 11 : i64} {
  func.func @_dueling_kernel(%arg0: i32, %arg1: memref<8x16xf32, #tpu.memory_space<vmem>>, %arg2: memref<408x128xf32, #tpu.memory_space<vmem>>, %arg3: memref<8x4xf32, #tpu.memory_space<vmem>>) attributes {dimension_semantics = [#tpu.dimension_semantics<parallel>], iteration_bounds = array<i64: 1>, scalar_prefetch = 0 : i64, scratch_operands = 0 : i64, tpu.core_type = #tpu.core_type<tc>, window_params = [{transform_indices = @transform_0, window_bounds = array<i64: 8, 16>}, {pipeline_mode = #tpu.pipeline_mode<synchronous>, transform_indices = @transform_1, window_bounds = array<i64: 408, 128>}, {transform_indices = @transform_2, window_bounds = array<i64: 8, 4>}]} {
    %c0 = arith.constant 0 : index
    %c0_0 = arith.constant 0 : index
    %0 = vector.load %arg1[%c0, %c0_0] : memref<8x16xf32, #tpu.memory_space<vmem>>, vector<8x16xf32>
    %c0_1 = arith.constant 0 : index
    %c0_2 = arith.constant 0 : index
    %1 = vector.load %arg2[%c0_1, %c0_2] : memref<408x128xf32, #tpu.memory_space<vmem>>, vector<16x128xf32>
    %c16 = arith.constant 16 : index
    %c0_3 = arith.constant 0 : index
    %2 = vector.load %arg2[%c16, %c0_3] : memref<408x128xf32, #tpu.memory_space<vmem>>, vector<128x128xf32>
    %c144 = arith.constant 144 : index
    %c0_4 = arith.constant 0 : index
    %3 = vector.load %arg2[%c144, %c0_4] : memref<408x128xf32, #tpu.memory_space<vmem>>, vector<128x128xf32>
    %c272 = arith.constant 272 : index
    %c0_5 = arith.constant 0 : index
    %4 = vector.load %arg2[%c272, %c0_5] : memref<408x128xf32, #tpu.memory_space<vmem>>, vector<128x128xf32>
    %c400 = arith.constant 400 : index
    %c0_6 = arith.constant 0 : index
    %5 = vector.load %arg2[%c400, %c0_6] : memref<408x128xf32, #tpu.memory_space<vmem>>, vector<8x128xf32>
    %6 = vector.extract_strided_slice %5 {offsets = [0, 0], sizes = [1, 128], strides = [1, 1]} : vector<8x128xf32> to vector<1x128xf32>
    %7 = vector.extract_strided_slice %5 {offsets = [1, 0], sizes = [1, 128], strides = [1, 1]} : vector<8x128xf32> to vector<1x128xf32>
    %8 = vector.extract_strided_slice %5 {offsets = [2, 0], sizes = [1, 128], strides = [1, 1]} : vector<8x128xf32> to vector<1x128xf32>
    %9 = vector.extract_strided_slice %5 {offsets = [3, 0], sizes = [1, 128], strides = [1, 1]} : vector<8x128xf32> to vector<1x128xf32>
    %cst = arith.constant dense<0.000000e+00> : vector<8x128xf32>
    %10 = tpu.matmul %0, %1, %cst {dimension_numbers = #tpu.dot_dimension_numbers<[1], [0], [0], [1], [0, 0, 1, 1], [], []>} : vector<8x16xf32>, vector<16x128xf32>, vector<8x128xf32> -> vector<8x128xf32>
    %11 = vector.broadcast %6 : vector<1x128xf32> to vector<8x128xf32>
    %12 = arith.addf %10, %11 : vector<8x128xf32>
    %cst_7 = arith.constant 0.000000e+00 : f32
    %13 = vector.broadcast %cst_7 : f32 to vector<8x128xf32>
    %14 = arith.maximumf %12, %13 : vector<8x128xf32>
    %cst_8 = arith.constant dense<0.000000e+00> : vector<8x128xf32>
    %15 = tpu.matmul %14, %2, %cst_8 {dimension_numbers = #tpu.dot_dimension_numbers<[1], [0], [0], [1], [0, 0, 1, 1], [], []>} : vector<8x128xf32>, vector<128x128xf32>, vector<8x128xf32> -> vector<8x128xf32>
    %16 = vector.broadcast %7 : vector<1x128xf32> to vector<8x128xf32>
    %17 = arith.addf %15, %16 : vector<8x128xf32>
    %cst_9 = arith.constant 0.000000e+00 : f32
    %18 = vector.broadcast %cst_9 : f32 to vector<8x128xf32>
    %19 = arith.maximumf %17, %18 : vector<8x128xf32>
    %cst_10 = arith.constant dense<0.000000e+00> : vector<8x128xf32>
    %20 = tpu.matmul %19, %3, %cst_10 {dimension_numbers = #tpu.dot_dimension_numbers<[1], [0], [0], [1], [0, 0, 1, 1], [], []>} : vector<8x128xf32>, vector<128x128xf32>, vector<8x128xf32> -> vector<8x128xf32>
    %21 = vector.broadcast %8 : vector<1x128xf32> to vector<8x128xf32>
    %22 = arith.addf %20, %21 : vector<8x128xf32>
    %cst_11 = arith.constant 0.000000e+00 : f32
    %23 = vector.broadcast %cst_11 : f32 to vector<8x128xf32>
    %24 = arith.maximumf %22, %23 : vector<8x128xf32>
    %cst_12 = arith.constant dense<0.000000e+00> : vector<8x128xf32>
    %25 = tpu.matmul %24, %4, %cst_12 {dimension_numbers = #tpu.dot_dimension_numbers<[1], [0], [0], [1], [0, 0, 1, 1], [], []>} : vector<8x128xf32>, vector<128x128xf32>, vector<8x128xf32> -> vector<8x128xf32>
    %26 = vector.broadcast %9 : vector<1x128xf32> to vector<8x128xf32>
    %27 = arith.addf %25, %26 : vector<8x128xf32>
    %28 = vector.extract_strided_slice %27 {offsets = [0, 0], sizes = [8, 4], strides = [1, 1]} : vector<8x128xf32> to vector<8x4xf32>
    %c0_13 = arith.constant 0 : index
    %c0_14 = arith.constant 0 : index
    %29 = vector.load %arg3[%c0_13, %c0_14] : memref<8x4xf32, #tpu.memory_space<vmem>>, vector<8x4xf32>
    tpu.vector_store %arg3[%c0_13, %c0_14], %28 {strides = array<i32>} : memref<8x4xf32, #tpu.memory_space<vmem>>, vector<8x4xf32>,
    return
  }
  func.func @transform_0(%arg0: i32) -> (i32, i32) {
    %c0_i32 = arith.constant 0 : i32
    %c0_i32_0 = arith.constant 0 : i32
    return %arg0, %c0_i32 : i32, i32
  }
  func.func @transform_1(%arg0: i32) -> (i32, i32) {
    %c0_i32 = arith.constant 0 : i32
    %c0_i32_0 = arith.constant 0 : i32
    %c0_i32_1 = arith.constant 0 : i32
    return %c0_i32, %c0_i32_0 : i32, i32
  }
  func.func @transform_2(%arg0: i32) -> (i32, i32) {
    %c0_i32 = arith.constant 0 : i32
    %c0_i32_0 = arith.constant 0 : i32
    return %arg0, %c0_i32 : i32, i32
  }
}

</mosaic_0001>

<llo_original>
// kernel: tpu_custom_call.1
$region0: #{tpu_custom_call.1}
  #allocation0 [shape = 'u32[]', space=smem, size = 0x4, offset = 0x4, fixed_abs, tag = 'smem constant byte address 0x4 - core index']
  #allocation1 [shape = 'u32[72,128]{1,0:T(1,128)}', space=vmem, size = 0x9000, scoped, tag = 'internal scratch']
  %s0 = inlined_call_operand.hbm [shape: f32[8,16], index: 0, kind: input, shape index: {}]
  %s1 = inlined_call_operand.hbm [shape: f32[408,128], index: 1, kind: input, shape index: {}]
  %s2 = inlined_call_operand.vmem [shape: f32[8,4], index: 2, kind: output, shape index: {}]
  %s3 = sld [smem:[#allocation0]]
  $region26: #{tpu_custom_call.1} parent=0
    _
  %s5 = ssub.s32 1, %s3
  %s6 = scalar_select 0, %s5, %s3
  $region1: #{tpu_custom_call.1} parent=0
    #allocation2 [shape = 'u8[4096]{0}', space=vmem, size = 0x1000, scoped, tag = 'input window, operand 0, single buffered']
    #allocation3 [shape = 's32[1]{0}', space=sflag, size = 0x4, scoped, tag = 'scoped memory for tpu_custom_call.1']
    #allocation4 [shape = 'u8[208896]{0}', space=vmem, size = 0x33000, scoped, tag = 'input window, operand 1, single buffered']
    #allocation5 [shape = 's32[1]{0}', space=sflag, size = 0x4, scoped, tag = 'scoped memory for tpu_custom_call.1']
    %7 = vsyncpa [#allocation3], 0
    %8 = vsyncpa [#allocation5], 0
    // Predicated region
    $region2: #{tpu_custom_call.1} parent=1 // pred_check
      _
    $region3: #{tpu_custom_call.1} parent=1 // pred_check_branch
      %10 = sbr.rel (0) target = $region5
    $region4: #{tpu_custom_call.1} parent=1 // pred_region
      %12 = vsyncadd [#allocation3], 0
      %s14 = sshll.u32 %s0, 4
      %s15 = int_to_ptr.hbm [resolvable:$true] %s14
      %s16 = sshll.u32 [#allocation2], 4
      %s17 = int_to_ptr.vmem [resolvable:$true] %s16
      %19 = dma.hbm_to_vmem [thread:$0]  %s15, 128, %s17, [#allocation3]
    $region5: #{tpu_custom_call.1} parent=1 // pred_fallthru
      _
    // Predicated region
    $region6: #{tpu_custom_call.1} parent=1 // pred_check
      _
    $region7: #{tpu_custom_call.1} parent=1 // pred_check_branch
      %21 = sbr.rel (0) target = $region9
    $region8: #{tpu_custom_call.1} parent=1 // pred_region
      %23 = vsyncadd [#allocation5], 0
      %s24 = sshll.u32 %s1, 4
      %s25 = int_to_ptr.hbm [resolvable:$true] %s24
      %s26 = sshll.u32 [#allocation4], 4
      %s27 = int_to_ptr.vmem [resolvable:$true] %s26
      %32 = dma.hbm_to_vmem [thread:$0]  %s25, 6528, %s27, [#allocation5], 128, 128, 8
    $region9: #{tpu_custom_call.1} parent=1 // pred_fallthru
      _
    // Predicated region
    $region10: #{tpu_custom_call.1} parent=1 // pred_check
      _
    $region11: #{tpu_custom_call.1} parent=1 // pred_check_branch
      %34 = sbr.rel (0) target = $region13
    $region12: #{tpu_custom_call.1} parent=1 // pred_region
      %36 = dma.done [#allocation3], 128
    $region13: #{tpu_custom_call.1} parent=1 // pred_fallthru
      _
    // Predicated region
    $region14: #{tpu_custom_call.1} parent=1 // pred_check
      _
    $region15: #{tpu_custom_call.1} parent=1 // pred_check_branch
      %38 = sbr.rel (0) target = $region17
    $region16: #{tpu_custom_call.1} parent=1 // pred_region
      %40 = dma.done [#allocation5], 6528
    $region17: #{tpu_custom_call.1} parent=1 // pred_fallthru
      _
    %v41 = vld [vmem:[#allocation2] sm:$0xff]
    %v42 = vld [vmem:[#allocation4] sm:$0xff]
    %v43 = vld [vmem:[#allocation4 + $0x8] sm:$0xff]
    %v44 = vld [vmem:[#allocation4 + $0x10] sm:$0xff]
    %v45 = vld [vmem:[#allocation4 + $0x18] sm:$0xff]
    %v46 = vld [vmem:[#allocation4 + $0x20] sm:$0xff]
    %v47 = vld [vmem:[#allocation4 + $0x28] sm:$0xff]
    %v48 = vld [vmem:[#allocation4 + $0x30] sm:$0xff]
    %v49 = vld [vmem:[#allocation4 + $0x38] sm:$0xff]
    %v50 = vld [vmem:[#allocation4 + $0x40] sm:$0xff]
    %v51 = vld [vmem:[#allocation4 + $0x48] sm:$0xff]
    %v52 = vld [vmem:[#allocation4 + $0x50] sm:$0xff]
    %v53 = vld [vmem:[#allocation4 + $0x58] sm:$0xff]
    %v54 = vld [vmem:[#allocation4 + $0x60] sm:$0xff]
    %v55 = vld [vmem:[#allocation4 + $0x68] sm:$0xff]
    %v56 = vld [vmem:[#allocation4 + $0x70] sm:$0xff]
    %v57 = vld [vmem:[#allocation4 + $0x78] sm:$0xff]
    %v58 = vld [vmem:[#allocation4 + $0x80] sm:$0xff]
    %v59 = vld [vmem:[#allocation4 + $0x88] sm:$0xff]
    %v60 = vld [vmem:[#allocation4 + $0x90] sm:$0xff]
    %v61 = vld [vmem:[#allocation4 + $0x98] sm:$0xff]
    %v62 = vld [vmem:[#allocation4 + $0xa0] sm:$0xff]
    %v63 = vld [vmem:[#allocation4 + $0xa8] sm:$0xff]
    %v64 = vld [vmem:[#allocation4 + $0xb0] sm:$0xff]
    %v65 = vld [vmem:[#allocation4 + $0xb8] sm:$0xff]
    %v66 = vld [vmem:[#allocation4 + $0xc0] sm:$0xff]
    %v67 = vld [vmem:[#allocation4 + $0xc8] sm:$0xff]
    %v68 = vld [vmem:[#allocation4 + $0xd0] sm:$0xff]
    %v69 = vld [vmem:[#allocation4 + $0xd8] sm:$0xff]
    %v70 = vld [vmem:[#allocation4 + $0xe0] sm:$0xff]
    %v71 = vld [vmem:[#allocation4 + $0xe8] sm:$0xff]
    %v72 = vld [vmem:[#allocation4 + $0xf0] sm:$0xff]
    %v73 = vld [vmem:[#allocation4 + $0xf8] sm:$0xff]
    %v74 = vld [vmem:[#allocation4 + $0x100] sm:$0xff]
    %v75 = vld [vmem:[#allocation4 + $0x108] sm:$0xff]
    %v76 = vld [vmem:[#allocation4 + $0x110] sm:$0xff]
    %v77 = vld [vmem:[#allocation4 + $0x118] sm:$0xff]
    %v78 = vld [vmem:[#allocation4 + $0x120] sm:$0xff]
    %v79 = vld [vmem:[#allocation4 + $0x128] sm:$0xff]
    %v80 = vld [vmem:[#allocation4 + $0x130] sm:$0xff]
    %v81 = vld [vmem:[#allocation4 + $0x138] sm:$0xff]
    %v82 = vld [vmem:[#allocation4 + $0x140] sm:$0xff]
    %v83 = vld [vmem:[#allocation4 + $0x148] sm:$0xff]
    %v84 = vld [vmem:[#allocation4 + $0x150] sm:$0xff]
    %v85 = vld [vmem:[#allocation4 + $0x158] sm:$0xff]
    %v86 = vld [vmem:[#allocation4 + $0x160] sm:$0xff]
    %v87 = vld [vmem:[#allocation4 + $0x168] sm:$0xff]
    %v88 = vld [vmem:[#allocation4 + $0x170] sm:$0xff]
    %v89 = vld [vmem:[#allocation4 + $0x178] sm:$0xff]
    %v90 = vld [vmem:[#allocation4 + $0x180] sm:$0xff]
    %v91 = vld [vmem:[#allocation4 + $0x188] sm:$0xff]
    %v92 = vld [vmem:[#allocation4 + $0x190] sm:$0xff]
    %v93 = vperm.slane %v92, 0
    %vm94 = vcmask 130048
    %v96 = vsel %vm94, %v41, 0
    %98 = vmatpush.msra.mxu0 0.0
    %99 = vmatpush.msra.mxu0 0.0
    %100 = vmatpush.msra.mxu0 0.0
    %101 = vmatpush.msra.mxu0 0.0
    %102 = vmatpush.msra.mxu0 0.0
    %103 = vmatpush.msra.mxu0 0.0
    %104 = vmatpush.msra.mxu0 0.0
    %105 = vmatpush.msra.mxu0 0.0
    %106 = vmatpush.msra.mxu0 0.0
    %107 = vmatpush.msra.mxu0 0.0
    %108 = vmatpush.msra.mxu0 0.0
    %109 = vmatpush.msra.mxu0 0.0
    %110 = vmatpush.msra.mxu0 0.0
    %111 = vmatpush.msra.mxu0 0.0
    %112 = vmatpush.msra.mxu0 %v43
    %113 = vmatpush.msra.mxu0 %v42
    %114 = vmatmul.f32.gmra.mxu0 %v96
    %v115 = vpop.f32.mrf.mxu0
    %v116 = vadd.f32 %v93, %v115
    %117 = vdwg.mxu0
    %v118 = vmax.f32 %v116, 0.0
    %v119 = vperm.slane %v92, 1
    %120 = vmatpush.msra.mxu0 %v59
    %121 = vmatpush.msra.mxu0 %v58
    %122 = vmatpush.msra.mxu0 %v57
    %123 = vmatpush.msra.mxu0 %v56
    %124 = vmatpush.msra.mxu0 %v55
    %125 = vmatpush.msra.mxu0 %v54
    %126 = vmatpush.msra.mxu0 %v53
    %127 = vmatpush.msra.mxu0 %v52
    %128 = vmatpush.msra.mxu0 %v51
    %129 = vmatpush.msra.mxu0 %v50
    %130 = vmatpush.msra.mxu0 %v49
    %131 = vmatpush.msra.mxu0 %v48
    %132 = vmatpush.msra.mxu0 %v47
    %133 = vmatpush.msra.mxu0 %v46
    %134 = vmatpush.msra.mxu0 %v45
    %135 = vmatpush.msra.mxu0 %v44
    %136 = vmatmul.f32.gmra.mxu0 %v118
    %v137 = vpop.f32.mrf.mxu0
    %v138 = vadd.f32 %v119, %v137
    %139 = vdwg.mxu0
    %v140 = vmax.f32 %v138, 0.0
    %v141 = vperm.slane %v92, 2
    %142 = vmatpush.msra.mxu0 %v75
    %143 = vmatpush.msra.mxu0 %v74
    %144 = vmatpush.msra.mxu0 %v73
    %145 = vmatpush.msra.mxu0 %v72
    %146 = vmatpush.msra.mxu0 %v71
    %147 = vmatpush.msra.mxu0 %v70
    %148 = vmatpush.msra.mxu0 %v69
    %149 = vmatpush.msra.mxu0 %v68
    %150 = vmatpush.msra.mxu0 %v67
    %151 = vmatpush.msra.mxu0 %v66
    %152 = vmatpush.msra.mxu0 %v65
    %153 = vmatpush.msra.mxu0 %v64
    %154 = vmatpush.msra.mxu0 %v63
    %155 = vmatpush.msra.mxu0 %v62
    %156 = vmatpush.msra.mxu0 %v61
    %157 = vmatpush.msra.mxu0 %v60
    %158 = vmatmul.f32.gmra.mxu0 %v140
    %v159 = vpop.f32.mrf.mxu0
    %v160 = vadd.f32 %v141, %v159
    %161 = vdwg.mxu0
    %v162 = vmax.f32 %v160, 0.0
    %v163 = vperm.slane %v92, 3
    %164 = vmatpush.msra.mxu0 %v91
    %165 = vmatpush.msra.mxu0 %v90
    %166 = vmatpush.msra.mxu0 %v89
    %167 = vmatpush.msra.mxu0 %v88
    %168 = vmatpush.msra.mxu0 %v87
    %169 = vmatpush.msra.mxu0 %v86
    %170 = vmatpush.msra.mxu0 %v85
    %171 = vmatpush.msra.mxu0 %v84
    %172 = vmatpush.msra.mxu0 %v83
    %173 = vmatpush.msra.mxu0 %v82
    %174 = vmatpush.msra.mxu0 %v81
    %175 = vmatpush.msra.mxu0 %v80
    %176 = vmatpush.msra.mxu0 %v79
    %177 = vmatpush.msra.mxu0 %v78
    %178 = vmatpush.msra.mxu0 %v77
    %179 = vmatpush.msra.mxu0 %v76
    %180 = vmatmul.f32.gmra.mxu0 %v162
    %v181 = vpop.f32.mrf.mxu0
    %v182 = vadd.f32 %v163, %v181
    %183 = vdwg.mxu0
    %vm184 = vcmask 31744
    %185 = vst.msk [vmem:[%s2] sm:$0xff] %vm184, %v182
    // Predicated region
    $region18: #{tpu_custom_call.1} parent=1 // pred_check
      _
    $region19: #{tpu_custom_call.1} parent=1 // pred_check_branch
      %187 = sbr.rel (0) target = $region21
    $region20: #{tpu_custom_call.1} parent=1 // pred_region
      _
    $region21: #{tpu_custom_call.1} parent=1 // pred_fallthru
      _
    // Predicated region
    $region22: #{tpu_custom_call.1} parent=1 // pred_check
      _
    $region23: #{tpu_custom_call.1} parent=1 // pred_check_branch
      %189 = sbr.rel (0) target = $region25
    $region24: #{tpu_custom_call.1} parent=1 // pred_region
      _
    $region25: #{tpu_custom_call.1} parent=1 // pred_fallthru
      _
    %190 = vsyncpa [#allocation3], 1
    %191 = vsyncpa [#allocation5], 1

</llo_original>
